<compile_context>
chip_gen: v7x
topology: tpu7x:2x2x1
jax: 0.10.0
libtpu: 0.0.40
codegen_flags: <defaults>
</compile_context>

<pallas_src>
import functools
from typing import NamedTuple

import jax
import jax.numpy as jnp
from jax.experimental import pallas as pl
from jax.experimental.pallas import tpu as pltpu


def _round_up(x, m):
    return ((x + m - 1) // m) * m


def _pick_k_tile(d_pad, tk_max):
    """Largest multiple of 128 that divides d_pad (itself a multiple of 128)
    and is <= tk_max.  Avoids K-padding waste for awkward C*T products."""
    best = 128
    t = 128
    while t <= min(tk_max, d_pad):
        if d_pad % t == 0:
            best = t
        t += 128
    return best


class EncoderMeta(NamedTuple):
    in_dim: int          # original D = C*T
    hidden_dim: int      # original H
    embedding_dim: int   # original E
    tk: int              # K tile (divides D_pad)
    tm: int              # max batch tile


# ----------------------------------------------------------------------------
# Kernel
# ----------------------------------------------------------------------------
def _encoder_kernel(x_ref, w1_ref, b1_ref, w2_ref, b2_ref, out_ref, acc_ref):
    """Fused, K-tiled 2-layer MLP: out = relu(x @ W1 + b1) @ W2 + b2.

    Grid = (B_pad // tm, D_pad // tk).  acc_ref holds b1 + x @ W1 in f32
    across the K axis; the epilogue (ReLU, second matmul, bias, store) runs
    only on the final K step.
    """
    k = pl.program_id(1)

    @pl.when(k == 0)
    def _init():
        # Fold the first bias into the accumulator init (saves the zero fill
        # and a tm x H_pad f32 add in the serialized epilogue).
        acc_ref[...] = jnp.broadcast_to(b1_ref[...], acc_ref.shape)

    # x tile arrives as f32 (no separate HBM cast pass); cast to bf16 here,
    # bf16 x bf16 -> f32 accumulate on the MXU.
    acc_ref[...] += jnp.dot(
        x_ref[...].astype(jnp.bfloat16),
        w1_ref[...],
        preferred_element_type=jnp.float32,
    )

    @pl.when(k == pl.num_programs(1) - 1)
    def _epilogue():
        h = jnp.maximum(acc_ref[...], 0.0)                       # f32 ReLU
        e = jnp.dot(
            h.astype(w2_ref.dtype), w2_ref[...],
            preferred_element_type=jnp.float32,
        )
        out_ref[...] = (e + b2_ref[...]).astype(out_ref.dtype)


# ----------------------------------------------------------------------------
# One-time parameter preparation (hoisted out of the per-call forward)
# ----------------------------------------------------------------------------
def prepare_params(params, *, tm=256, tk_max=512):
    """Pad + cast the encoder weights to TPU-friendly shapes/dtypes ONCE.

    Returns (padded_params, meta).  Call this a single time and reuse the
    result for every forward call; the forward itself then streams only the
    already-bf16, already lane/sublane-dense weights.
    """
    w1, b1, w2, b2 = params["w1"], params["b1"], params["w2"], params["b2"]
    D, H = w1.shape
    E = w2.shape[1]

    D_pad = _round_up(D, 128)
    tk = _pick_k_tile(D_pad, tk_max)     # divides D_pad -> no K-padding waste
    H_pad = _round_up(H, 128)
    E_pad = _round_up(E, 128)

    padded = {
        # bf16 streamed/resident matmul operands; zero pad rows/cols
        # contribute exactly 0 to the products.
        "w1": jnp.pad(w1, ((0, D_pad - D), (0, H_pad - H))).astype(jnp.bfloat16),
        "w2": jnp.pad(w2, ((0, H_pad - H), (0, E_pad - E))).astype(jnp.bfloat16),
        # f32 biases (applied in the f32 accumulator / epilogue).
        "b1": jnp.pad(b1, ((0, 0), (0, H_pad - H))).astype(jnp.float32),
        "b2": jnp.pad(b2, ((0, 0), (0, E_pad - E))).astype(jnp.float32),
    }
    meta = EncoderMeta(in_dim=D, hidden_dim=H, embedding_dim=E, tk=tk, tm=tm)
    return padded, meta


# ----------------------------------------------------------------------------
# Forward
# ----------------------------------------------------------------------------
@functools.partial(jax.jit, static_argnames=("meta",))
def _forward_jit(eeg, w1_p, b1_p, w2_p, b2_p, meta):
    B = eeg.shape[0]
    x = eeg.reshape(B, -1).astype(jnp.float32)                   # (B, C*T)
    D = x.shape[1]
    assert D == meta.in_dim, (D, meta.in_dim)

    D_pad, H_pad = w1_p.shape
    E_pad = w2_p.shape[1]
    tk = meta.tk

    # Batch tile: big enough to amortize W1 streaming, rounded to 16 rows so
    # bf16 operands fully pack each vreg even for tiny batches.
    tm = min(meta.tm, _round_up(B, 16))
    B_pad = _round_up(B, tm)

    if (B_pad, D_pad) != (B, D):
        x = jnp.pad(x, ((0, B_pad - B), (0, D_pad - D)))

    grid = (B_pad // tm, D_pad // tk)

    # VMEM budget for the chosen tiles (double-buffered streamed operands,
    # single-buffered residents, f32 accumulator) + headroom.
    footprint = (
        tm * tk * 4 * 2            # x tile (f32, 2 buffers)
        + tk * H_pad * 2 * 2       # W1 tile (bf16, 2 buffers)
        + 1 * H_pad * 4            # b1 (resident)
        + H_pad * E_pad * 2        # W2 (resident)
        + 1 * E_pad * 4            # b2 (resident)
        + tm * E_pad * 4 * 2       # out tile (f32, 2 buffers)
        + tm * H_pad * 4           # accumulator scratch
    )
    vmem_limit = max(32 << 20, int(1.5 * footprint) + (2 << 20))
    vmem_limit = min(vmem_limit, 60 << 20)   # stay under v7x's 64 MiB VMEM

    resident = pl.Buffered(1)  # constant index_map -> no need to double-buffer

    out_pad = pl.pallas_call(
        _encoder_kernel,
        out_shape=jax.ShapeDtypeStruct((B_pad, E_pad), jnp.float32),
        grid_spec=pltpu.PrefetchScalarGridSpec(
            num_scalar_prefetch=0,
            grid=grid,
            in_specs=[
                pl.BlockSpec((tm, tk), lambda i, k: (i, k)),            # x tile (f32)
                pl.BlockSpec((tk, H_pad), lambda i, k: (k, 0)),         # W1 tile (bf16)
                pl.BlockSpec((1, H_pad), lambda i, k: (0, 0),
                             pipeline_mode=resident),                   # b1
                pl.BlockSpec((H_pad, E_pad), lambda i, k: (0, 0),
                             pipeline_mode=resident),                   # W2
                pl.BlockSpec((1, E_pad), lambda i, k: (0, 0),
                             pipeline_mode=resident),                   # b2
            ],
            out_specs=pl.BlockSpec((tm, E_pad), lambda i, k: (i, 0)),
            scratch_shapes=[pltpu.VMEM((tm, H_pad), jnp.float32)],
        ),
        # Reduction (K) axis last + "arbitrary"; batch axis "parallel"
        # (inert on the single-TC v5e/v6e; on v7x only pays off once the
        # per-core batch share amortizes its W1 stream).
        compiler_params=pltpu.CompilerParams(
            dimension_semantics=("parallel", "arbitrary"),
            vmem_limit_bytes=vmem_limit,
        ),
    )(x, w1_p, b1_p, w2_p, b2_p)

    return out_pad[:B, :meta.embedding_dim]


def eeg_classification_net_forward(eeg, padded_params, meta):
    """Equivalent of EEGClassificationNet.forward / get_eeg_embedding."""
    return _forward_jit(
        eeg,
        padded_params["w1"], padded_params["b1"],
        padded_params["w2"], padded_params["b2"],
        meta,
    )


# ----------------------------------------------------------------------------
# Params / reference
# ----------------------------------------------------------------------------
def init_params(key, in_dim, hidden_dim, embedding_dim, num_classes):
    k1, k2, k3, k4, k5, k6 = jax.random.split(key, 6)
    s1 = 1.0 / jnp.sqrt(in_dim)
    s2 = 1.0 / jnp.sqrt(hidden_dim)
    s3 = 1.0 / jnp.sqrt(embedding_dim)
    return {
        # synthetic backbone (encoder) params
        "w1": jax.random.normal(k1, (in_dim, hidden_dim), jnp.float32) * s1,
        "b1": jax.random.normal(k2, (1, hidden_dim), jnp.float32) * s1,
        "w2": jax.random.normal(k3, (hidden_dim, embedding_dim), jnp.float32) * s2,
        "b2": jax.random.normal(k4, (1, embedding_dim), jnp.float32) * s2,
        # classifier = nn.Linear(embedding_dim, num_classes): defined in
        # __init__ but unused by forward(); kept for parameter-shape fidelity.
        "wc": jax.random.normal(k5, (embedding_dim, num_classes), jnp.float32) * s3,
        "bc": jax.random.normal(k6, (1, num_classes), jnp.float32) * s3,
    }


def _reference_forward(eeg, params):
    """Pure-JAX reference matching the kernel's bf16-operand / f32-accum math.

    Note: bf16 weights/activations are an intentional precision choice vs.
    the f32 PyTorch model (~1e-2-level deviation); accumulation and biases
    stay f32.
    """
    B = eeg.shape[0]
    x = eeg.reshape(B, -1).astype(jnp.bfloat16)
    w1 = params["w1"].astype(jnp.bfloat16)
    w2 = params["w2"].astype(jnp.bfloat16)
    h = jnp.dot(x, w1, preferred_element_type=jnp.float32) + params["b1"]
    h = jnp.maximum(h, 0.0)
    e = jnp.dot(h.astype(jnp.bfloat16), w2, preferred_element_type=jnp.float32)
    return e + params["b2"]


if __name__ == "__main__":
    # Small shapes consistent with an EEG encoder:
    #   batch=2, eeg channels=4, time samples=16, hidden=32,
    #   embedding_dim=32, num_classes=3.
    # Inside the kernel these pad to dense (16,128) tiles; for real
    # throughput feed batches of >=256 windows — the same code path tiles
    # and pipelines automatically.
    B, C, T = 2, 4, 16
    HIDDEN, EMBEDDING_DIM, NUM_CLASSES = 32, 32, 3

    key = jax.random.PRNGKey(0)
    k_eeg, k_params = jax.random.split(key)
    eeg = jax.random.normal(k_eeg, (B, C, T), jnp.float32)
    params = init_params(k_params, C * T, HIDDEN, EMBEDDING_DIM, NUM_CLASSES)

    # One-time weight preparation (hoisted out of the per-call forward).
    padded_params, meta = prepare_params(params)

    out = eeg_classification_net_forward(eeg, padded_params, meta)
    out = jax.block_until_ready(out)

    ref = _reference_forward(eeg, params)
    assert out.shape == (B, EMBEDDING_DIM), out.shape
    assert jnp.allclose(out, ref, atol=2e-2, rtol=2e-2), (
        float(jnp.max(jnp.abs(out - ref))))

    print("KERNEL_OK")
</pallas_src>

<mosaic_0001>
module attributes {stable_mosaic.version = 11 : i64} {
  func.func @_encoder_kernel(%arg0: i32, %arg1: i32, %arg2: memref<16x128xf32, #tpu.memory_space<vmem>>, %arg3: memref<128x128xbf16, #tpu.memory_space<vmem>>, %arg4: memref<1x128xf32, #tpu.memory_space<vmem>>, %arg5: memref<128x128xbf16, #tpu.memory_space<vmem>>, %arg6: memref<1x128xf32, #tpu.memory_space<vmem>>, %arg7: memref<16x128xf32, #tpu.memory_space<vmem>>, %arg8: memref<16x128xf32, #tpu.memory_space<vmem>>) attributes {dimension_semantics = [#tpu.dimension_semantics<parallel>, #tpu.dimension_semantics<arbitrary>], iteration_bounds = array<i64: 1, 1>, scalar_prefetch = 0 : i64, scratch_operands = 1 : i64, tpu.core_type = #tpu.core_type<tc>, window_params = [{transform_indices = @transform_0, window_bounds = array<i64: 16, 128>}, {transform_indices = @transform_1, window_bounds = array<i64: 128, 128>}, {pipeline_mode = #tpu.pipeline_mode<synchronous>, transform_indices = @transform_2, window_bounds = array<i64: 1, 128>}, {pipeline_mode = #tpu.pipeline_mode<synchronous>, transform_indices = @transform_3, window_bounds = array<i64: 128, 128>}, {pipeline_mode = #tpu.pipeline_mode<synchronous>, transform_indices = @transform_4, window_bounds = array<i64: 1, 128>}, {transform_indices = @transform_5, window_bounds = array<i64: 16, 128>}]} {
    %c0_i32 = arith.constant 0 : i32
    %0 = arith.cmpi eq, %arg1, %c0_i32 : i32
    %1 = arith.extui %0 : i1 to i32
    %c0_i32_0 = arith.constant 0 : i32
    %2 = arith.cmpi ne, %1, %c0_i32_0 : i32
    scf.if %2 {
      %c0_10 = arith.constant 0 : index
      %c0_11 = arith.constant 0 : index
      %13 = vector.load %arg4[%c0_10, %c0_11] : memref<1x128xf32, #tpu.memory_space<vmem>>, vector<1x128xf32>
      %14 = vector.shape_cast %13 : vector<1x128xf32> to vector<1x128xf32>
      %15 = vector.broadcast %14 : vector<1x128xf32> to vector<16x128xf32>
      %c0_12 = arith.constant 0 : index
      %c0_13 = arith.constant 0 : index
      %16 = vector.load %arg8[%c0_12, %c0_13] : memref<16x128xf32, #tpu.memory_space<vmem>>, vector<16x128xf32>
      tpu.vector_store %arg8[%c0_12, %c0_13], %15 {strides = array<i32>} : memref<16x128xf32, #tpu.memory_space<vmem>>, vector<16x128xf32>,
    } else {
    }
    %c0 = arith.constant 0 : index
    %c0_1 = arith.constant 0 : index
    %3 = vector.load %arg8[%c0, %c0_1] : memref<16x128xf32, #tpu.memory_space<vmem>>, vector<16x128xf32>
    %c0_2 = arith.constant 0 : index
    %c0_3 = arith.constant 0 : index
    %4 = vector.load %arg2[%c0_2, %c0_3] : memref<16x128xf32, #tpu.memory_space<vmem>>, vector<16x128xf32>
    %5 = arith.truncf %4 : vector<16x128xf32> to vector<16x128xbf16>
    %c0_4 = arith.constant 0 : index
    %c0_5 = arith.constant 0 : index
    %6 = vector.load %arg3[%c0_4, %c0_5] : memref<128x128xbf16, #tpu.memory_space<vmem>>, vector<128x128xbf16>
    %cst = arith.constant dense<0.000000e+00> : vector<16x128xf32>
    %7 = tpu.matmul %5, %6, %cst {dimension_numbers = #tpu.dot_dimension_numbers<[1], [0], [0], [1], [0, 0, 1, 1], [], []>} : vector<16x128xbf16>, vector<128x128xbf16>, vector<16x128xf32> -> vector<16x128xf32>
    %8 = arith.addf %3, %7 : vector<16x128xf32>
    %c0_6 = arith.constant 0 : index
    %c0_7 = arith.constant 0 : index
    %9 = vector.load %arg8[%c0_6, %c0_7] : memref<16x128xf32, #tpu.memory_space<vmem>>, vector<16x128xf32>
    tpu.vector_store %arg8[%c0_6, %c0_7], %8 {strides = array<i32>} : memref<16x128xf32, #tpu.memory_space<vmem>>, vector<16x128xf32>,
    %c0_i32_8 = arith.constant 0 : i32
    %10 = arith.cmpi eq, %arg1, %c0_i32_8 : i32
    %11 = arith.extui %10 : i1 to i32
    %c0_i32_9 = arith.constant 0 : i32
    %12 = arith.cmpi ne, %11, %c0_i32_9 : i32
    scf.if %12 {
      %c0_10 = arith.constant 0 : index
      %c0_11 = arith.constant 0 : index
      %13 = vector.load %arg8[%c0_10, %c0_11] : memref<16x128xf32, #tpu.memory_space<vmem>>, vector<16x128xf32>
      %cst_12 = arith.constant 0.000000e+00 : f32
      %14 = vector.broadcast %cst_12 : f32 to vector<16x128xf32>
      %15 = arith.maximumf %13, %14 : vector<16x128xf32>
      %16 = arith.truncf %15 : vector<16x128xf32> to vector<16x128xbf16>
      %c0_13 = arith.constant 0 : index
      %c0_14 = arith.constant 0 : index
      %17 = vector.load %arg5[%c0_13, %c0_14] : memref<128x128xbf16, #tpu.memory_space<vmem>>, vector<128x128xbf16>
      %cst_15 = arith.constant dense<0.000000e+00> : vector<16x128xf32>
      %18 = tpu.matmul %16, %17, %cst_15 {dimension_numbers = #tpu.dot_dimension_numbers<[1], [0], [0], [1], [0, 0, 1, 1], [], []>} : vector<16x128xbf16>, vector<128x128xbf16>, vector<16x128xf32> -> vector<16x128xf32>
      %c0_16 = arith.constant 0 : index
      %c0_17 = arith.constant 0 : index
      %19 = vector.load %arg6[%c0_16, %c0_17] : memref<1x128xf32, #tpu.memory_space<vmem>>, vector<1x128xf32>
      %20 = vector.broadcast %19 : vector<1x128xf32> to vector<16x128xf32>
      %21 = arith.addf %18, %20 : vector<16x128xf32>
      %c0_18 = arith.constant 0 : index
      %c0_19 = arith.constant 0 : index
      %22 = vector.load %arg7[%c0_18, %c0_19] : memref<16x128xf32, #tpu.memory_space<vmem>>, vector<16x128xf32>
      tpu.vector_store %arg7[%c0_18, %c0_19], %21 {strides = array<i32>} : memref<16x128xf32, #tpu.memory_space<vmem>>, vector<16x128xf32>,
    } else {
    }
    return
  }
  func.func @transform_0(%arg0: i32, %arg1: i32) -> (i32, i32) {
    %c0_i32 = arith.constant 0 : i32
    return %arg0, %arg1 : i32, i32
  }
  func.func @transform_1(%arg0: i32, %arg1: i32) -> (i32, i32) {
    %c0_i32 = arith.constant 0 : i32
    %c0_i32_0 = arith.constant 0 : i32
    return %arg1, %c0_i32 : i32, i32
  }
  func.func @transform_2(%arg0: i32, %arg1: i32) -> (i32, i32) {
    %c0_i32 = arith.constant 0 : i32
    %c0_i32_0 = arith.constant 0 : i32
    %c0_i32_1 = arith.constant 0 : i32
    return %c0_i32, %c0_i32_0 : i32, i32
  }
  func.func @transform_3(%arg0: i32, %arg1: i32) -> (i32, i32) {
    %c0_i32 = arith.constant 0 : i32
    %c0_i32_0 = arith.constant 0 : i32
    %c0_i32_1 = arith.constant 0 : i32
    return %c0_i32, %c0_i32_0 : i32, i32
  }
  func.func @transform_4(%arg0: i32, %arg1: i32) -> (i32, i32) {
    %c0_i32 = arith.constant 0 : i32
    %c0_i32_0 = arith.constant 0 : i32
    %c0_i32_1 = arith.constant 0 : i32
    return %c0_i32, %c0_i32_0 : i32, i32
  }
  func.func @transform_5(%arg0: i32, %arg1: i32) -> (i32, i32) {
    %c0_i32 = arith.constant 0 : i32
    %c0_i32_0 = arith.constant 0 : i32
    return %arg0, %c0_i32 : i32, i32
  }
}

</mosaic_0001>

<llo_original>
// kernel: _forward_jit.1
$region0: #{_forward_jit.1}
  #allocation0 [shape = 'u32[]', space=smem, size = 0x4, offset = 0x4, fixed_abs, tag = 'smem constant byte address 0x4 - core index']
  #allocation1 [shape = 'u32[144,128]{1,0:T(1,128)}', space=vmem, size = 0x12000, scoped, tag = 'internal scratch']
  #allocation2 [shape = 'f32[16,128]{1,0:T(8,128)}', space=vmem, size = 0x2000, scoped, tag = 'scratch operand']
  %s0 = inlined_call_operand.vmem [shape: f32[16,128], index: 0, kind: input, shape index: {}]
  %s1 = inlined_call_operand.hbm [shape: bf16[128,128], index: 1, kind: input, shape index: {}]
  %s2 = inlined_call_operand.vmem [shape: f32[1,128], index: 2, kind: input, shape index: {}]
  %s3 = inlined_call_operand.hbm [shape: bf16[128,128], index: 3, kind: input, shape index: {}]
  %s4 = inlined_call_operand.vmem [shape: f32[1,128], index: 4, kind: input, shape index: {}]
  %s5 = inlined_call_operand.vmem [shape: f32[16,128], index: 5, kind: output, shape index: {}]
  %s6 = sld [smem:[#allocation0]]
  $region46: #{_forward_jit.1} parent=0
    _
  %s8 = ssub.s32 1, %s6
  %s9 = scalar_select 0, %s8, %s6
  $region1: #{_forward_jit.1} parent=0
    #allocation3 [shape = 'u8[32768]{0}', space=vmem, size = 0x8000, scoped, tag = 'input window, operand 1, single buffered']
    #allocation4 [shape = 's32[1]{0}', space=sflag, size = 0x4, scoped, tag = 'scoped memory for _forward_jit.1']
    #allocation5 [shape = 'u8[32768]{0}', space=vmem, size = 0x8000, scoped, tag = 'input window, operand 3, single buffered']
    #allocation6 [shape = 's32[1]{0}', space=sflag, size = 0x4, scoped, tag = 'scoped memory for _forward_jit.1']
    %10 = vsyncpa [#allocation4], 0
    %11 = vsyncpa [#allocation6], 0
    // Predicated region
    $region2: #{_forward_jit.1} parent=1 // pred_check
      _
    $region3: #{_forward_jit.1} parent=1 // pred_check_branch
      %13 = sbr.rel (0) target = $region5
    $region4: #{_forward_jit.1} parent=1 // pred_region
      _
    $region5: #{_forward_jit.1} parent=1 // pred_fallthru
      _
    // Predicated region
    $region6: #{_forward_jit.1} parent=1 // pred_check
      _
    $region7: #{_forward_jit.1} parent=1 // pred_check_branch
      %15 = sbr.rel (0) target = $region9
    $region8: #{_forward_jit.1} parent=1 // pred_region
      %s17 = ssub.s32 1024, 1024
      %18 = vsyncadd [#allocation4], %s17
      %s19 = sshll.u32 [#allocation3], 4
      %s20 = int_to_ptr.vmem [resolvable:$true] %s19
      %25 = dma.hbm_to_vmem [thread:$0]  %s1, 1024, %s20, [#allocation4], 64, 64, 4
    $region9: #{_forward_jit.1} parent=1 // pred_fallthru
      _
    // Predicated region
    $region10: #{_forward_jit.1} parent=1 // pred_check
      _
    $region11: #{_forward_jit.1} parent=1 // pred_check_branch
      %27 = sbr.rel (0) target = $region13
    $region12: #{_forward_jit.1} parent=1 // pred_region
      _
    $region13: #{_forward_jit.1} parent=1 // pred_fallthru
      _
    // Predicated region
    $region14: #{_forward_jit.1} parent=1 // pred_check
      _
    $region15: #{_forward_jit.1} parent=1 // pred_check_branch
      %29 = sbr.rel (0) target = $region17
    $region16: #{_forward_jit.1} parent=1 // pred_region
      %s31 = ssub.s32 1024, 1024
      %32 = vsyncadd [#allocation6], %s31
      %s33 = sshll.u32 [#allocation5], 4
      %s34 = int_to_ptr.vmem [resolvable:$true] %s33
      %39 = dma.hbm_to_vmem [thread:$0]  %s3, 1024, %s34, [#allocation6], 64, 64, 4
    $region17: #{_forward_jit.1} parent=1 // pred_fallthru
      _
    // Predicated region
    $region18: #{_forward_jit.1} parent=1 // pred_check
      _
    $region19: #{_forward_jit.1} parent=1 // pred_check_branch
      %41 = sbr.rel (0) target = $region21
    $region20: #{_forward_jit.1} parent=1 // pred_region
      _
    $region21: #{_forward_jit.1} parent=1 // pred_fallthru
      _
    // Predicated region
    $region22: #{_forward_jit.1} parent=1 // pred_check
      _
    $region23: #{_forward_jit.1} parent=1 // pred_check_branch
      %43 = sbr.rel (0) target = $region25
    $region24: #{_forward_jit.1} parent=1 // pred_region
      %44 = dma.done [#allocation4], 1024
    $region25: #{_forward_jit.1} parent=1 // pred_fallthru
      _
    // Predicated region
    $region26: #{_forward_jit.1} parent=1 // pred_check
      _
    $region27: #{_forward_jit.1} parent=1 // pred_check_branch
      %46 = sbr.rel (0) target = $region29
    $region28: #{_forward_jit.1} parent=1 // pred_region
      %47 = dma.done [#allocation6], 1024
    $region29: #{_forward_jit.1} parent=1 // pred_fallthru
      _
    %p49 = scmp.eq.s32.totalorder 0, 0
    // Predicated region
    $region30: #{_forward_jit.1} parent=1 // pred_check
      %p50 = pneg %p49
    $region31: #{_forward_jit.1} parent=1 // pred_check_branch
      %52 = sbr.rel (%p50) target = $region33
    $region32: #{_forward_jit.1} parent=1 // pred_region
      %v53 = vld [vmem:[%s2] sm:$0x1]
      %v55 = vlaneseq
      %v56 = vshrl.u32 %v55, 7
      %v57 = vsub.s32 0, %v56
      %v58 = vrot.slane %v53, %v57
      %60 = vst [vmem:[#allocation2] sm:$0xff] %v58
      %61 = vst [vmem:[#allocation2 + $0x8] sm:$0xff] %v58
    $region33: #{_forward_jit.1} parent=1 // pred_fallthru
      _
    %v62 = vld [vmem:[#allocation2] sm:$0xff]
    %v63 = vld [vmem:[#allocation2 + $0x8] sm:$0xff]
    %v64 = vld [vmem:[%s0] sm:$0xff]
    %v65 = vld [vmem:[%s0 + $0x8] sm:$0xff]
    %v66 = vpack.c.bf16 %v65, %v64
    %v67 = vld [vmem:[#allocation3] sm:$0xf]
    %v68 = vld [vmem:[#allocation3 + $0x4] sm:$0xf]
    %v69 = vld [vmem:[#allocation3 + $0x8] sm:$0xf]
    %v70 = vld [vmem:[#allocation3 + $0xc] sm:$0xf]
    %v71 = vld [vmem:[#allocation3 + $0x10] sm:$0xf]
    %v72 = vld [vmem:[#allocation3 + $0x14] sm:$0xf]
    %v73 = vld [vmem:[#allocation3 + $0x18] sm:$0xf]
    %v74 = vld [vmem:[#allocation3 + $0x1c] sm:$0xf]
    %v75 = vld [vmem:[#allocation3 + $0x20] sm:$0xf]
    %v76 = vld [vmem:[#allocation3 + $0x24] sm:$0xf]
    %v77 = vld [vmem:[#allocation3 + $0x28] sm:$0xf]
    %v78 = vld [vmem:[#allocation3 + $0x2c] sm:$0xf]
    %v79 = vld [vmem:[#allocation3 + $0x30] sm:$0xf]
    %v80 = vld [vmem:[#allocation3 + $0x34] sm:$0xf]
    %v81 = vld [vmem:[#allocation3 + $0x38] sm:$0xf]
    %v82 = vld [vmem:[#allocation3 + $0x3c] sm:$0xf]
    %v99 = vunpack.c.l.b16 %v67
    %v100 = vunpack.c.l.b16 %v68
    %v101 = vunpack.c.l.b16 %v69
    %v102 = vunpack.c.l.b16 %v70
    %v103 = vunpack.c.l.b16 %v71
    %v104 = vunpack.c.l.b16 %v72
    %v105 = vunpack.c.l.b16 %v73
    %v106 = vunpack.c.l.b16 %v74
    %v107 = vunpack.c.l.b16 %v75
    %v108 = vunpack.c.l.b16 %v76
    %v109 = vunpack.c.l.b16 %v77
    %v110 = vunpack.c.l.b16 %v78
    %v111 = vunpack.c.l.b16 %v79
    %v112 = vunpack.c.l.b16 %v80
    %v113 = vunpack.c.l.b16 %v81
    %v114 = vunpack.c.l.b16 %v82
    %v115 = vpack.c.b16 %v100, %v99
    %v116 = vpack.c.b16 %v102, %v101
    %v117 = vpack.c.b16 %v104, %v103
    %v118 = vpack.c.b16 %v106, %v105
    %v119 = vpack.c.b16 %v108, %v107
    %v120 = vpack.c.b16 %v110, %v109
    %v121 = vpack.c.b16 %v112, %v111
    %v122 = vpack.c.b16 %v114, %v113
    %131 = vmatprep.subr.bf16.mxu0 0
    %132 = vmatpush1.bf16.msra.mxu0 %v115
    %133 = vmatprep.subr.bf16.mxu0 0
    %134 = vmatpush1.bf16.msra.mxu0 %v116
    %135 = vmatprep.subr.bf16.mxu0 0
    %136 = vmatpush1.bf16.msra.mxu0 %v117
    %137 = vmatprep.subr.bf16.mxu0 0
    %138 = vmatpush1.bf16.msra.mxu0 %v118
    %139 = vmatprep.subr.bf16.mxu0 0
    %140 = vmatpush1.bf16.msra.mxu0 %v119
    %141 = vmatprep.subr.bf16.mxu0 0
    %142 = vmatpush1.bf16.msra.mxu0 %v120
    %143 = vmatprep.subr.bf16.mxu0 0
    %144 = vmatpush1.bf16.msra.mxu0 %v121
    %145 = vmatprep.subr.bf16.mxu0 0
    %146 = vmatpush1.bf16.msra.mxu0 %v122
    %147 = vmatprep.subr.bf16.mxu0 0
    %148 = vmatpush1.bf16.msra.mxu0 0
    %149 = vmatprep.subr.bf16.mxu0 0
    %150 = vmatpush1.bf16.msra.mxu0 0
    %151 = vmatprep.subr.bf16.mxu0 0
    %152 = vmatpush1.bf16.msra.mxu0 0
    %153 = vmatprep.subr.bf16.mxu0 0
    %154 = vmatpush1.bf16.msra.mxu0 0
    %155 = vmatprep.subr.bf16.mxu0 0
    %156 = vmatpush1.bf16.msra.mxu0 0
    %157 = vmatprep.subr.bf16.mxu0 0
    %158 = vmatpush1.bf16.msra.mxu0 0
    %159 = vmatprep.subr.bf16.mxu0 0
    %160 = vmatpush1.bf16.msra.mxu0 0
    %161 = vmatprep.subr.bf16.mxu0 0
    %162 = vmatpush1.bf16.msra.mxu0 0
    %163 = vmatprep.mubr.bf16.mxu0 0
    %164 = vmatmul.mubr.bf16.gmra.mrb[0].mxu0 %v66
    %v165 = vpop.f32.mrb[0].mxu0
    %v166 = vadd.f32 0.0, %v165
    %v167 = vpop.f32.mrb[0].mxu0
    %v168 = vpop.f32.mrb[0].mxu0
    %v169 = vadd.f32 0.0, %v168
    %v170 = vpop.f32.mrb[0].mxu0
    %171 = vdwg.mxu0
    %v172 = vadd.f32 %v62, %v166
    %v173 = vadd.f32 %v63, %v169
    %174 = vst [vmem:[#allocation2] sm:$0xff] %v172
    %175 = vst [vmem:[#allocation2 + $0x8] sm:$0xff] %v173
    // Predicated region
    $region34: #{_forward_jit.1} parent=1 // pred_check
      %p176 = pneg %p49
    $region35: #{_forward_jit.1} parent=1 // pred_check_branch
      %178 = sbr.rel (%p176) target = $region37
    $region36: #{_forward_jit.1} parent=1 // pred_region
      %v179 = vld [vmem:[#allocation2] sm:$0xff]
      %v180 = vld [vmem:[#allocation2 + $0x8] sm:$0xff]
      %v181 = vmax.f32 %v179, 0.0
      %v182 = vmax.f32 %v180, 0.0
      %v183 = vpack.c.bf16 %v182, %v181
      %v184 = vld [vmem:[#allocation5] sm:$0xf]
      %v185 = vld [vmem:[#allocation5 + $0x4] sm:$0xf]
      %v186 = vld [vmem:[#allocation5 + $0x8] sm:$0xf]
      %v187 = vld [vmem:[#allocation5 + $0xc] sm:$0xf]
      %v188 = vld [vmem:[#allocation5 + $0x10] sm:$0xf]
      %v189 = vld [vmem:[#allocation5 + $0x14] sm:$0xf]
      %v190 = vld [vmem:[#allocation5 + $0x18] sm:$0xf]
      %v191 = vld [vmem:[#allocation5 + $0x1c] sm:$0xf]
      %v192 = vld [vmem:[#allocation5 + $0x20] sm:$0xf]
      %v193 = vld [vmem:[#allocation5 + $0x24] sm:$0xf]
      %v194 = vld [vmem:[#allocation5 + $0x28] sm:$0xf]
      %v195 = vld [vmem:[#allocation5 + $0x2c] sm:$0xf]
      %v196 = vld [vmem:[#allocation5 + $0x30] sm:$0xf]
      %v197 = vld [vmem:[#allocation5 + $0x34] sm:$0xf]
      %v198 = vld [vmem:[#allocation5 + $0x38] sm:$0xf]
      %v199 = vld [vmem:[#allocation5 + $0x3c] sm:$0xf]
      %v200 = vld [vmem:[%s4] sm:$0x1]
      %v202 = vlaneseq
      %v203 = vshrl.u32 %v202, 7
      %v204 = vsub.s32 0, %v203
      %v205 = vrot.slane %v200, %v204
      %v223 = vunpack.c.l.b16 %v184
      %v224 = vunpack.c.l.b16 %v185
      %v225 = vunpack.c.l.b16 %v186
      %v226 = vunpack.c.l.b16 %v187
      %v227 = vunpack.c.l.b16 %v188
      %v228 = vunpack.c.l.b16 %v189
      %v229 = vunpack.c.l.b16 %v190
      %v230 = vunpack.c.l.b16 %v191
      %v231 = vunpack.c.l.b16 %v192
      %v232 = vunpack.c.l.b16 %v193
      %v233 = vunpack.c.l.b16 %v194
      %v234 = vunpack.c.l.b16 %v195
      %v235 = vunpack.c.l.b16 %v196
      %v236 = vunpack.c.l.b16 %v197
      %v237 = vunpack.c.l.b16 %v198
      %v238 = vunpack.c.l.b16 %v199
      %v239 = vpack.c.b16 %v224, %v223
      %v240 = vpack.c.b16 %v226, %v225
      %v241 = vpack.c.b16 %v228, %v227
      %v242 = vpack.c.b16 %v230, %v229
      %v243 = vpack.c.b16 %v232, %v231
      %v244 = vpack.c.b16 %v234, %v233
      %v245 = vpack.c.b16 %v236, %v235
      %v246 = vpack.c.b16 %v238, %v237
      %255 = vmatprep.subr.bf16.mxu0 0
      %256 = vmatpush1.bf16.msra.mxu0 %v239
      %257 = vmatprep.subr.bf16.mxu0 0
      %258 = vmatpush1.bf16.msra.mxu0 %v240
      %259 = vmatprep.subr.bf16.mxu0 0
      %260 = vmatpush1.bf16.msra.mxu0 %v241
      %261 = vmatprep.subr.bf16.mxu0 0
      %262 = vmatpush1.bf16.msra.mxu0 %v242
      %263 = vmatprep.subr.bf16.mxu0 0
      %264 = vmatpush1.bf16.msra.mxu0 %v243
      %265 = vmatprep.subr.bf16.mxu0 0
      %266 = vmatpush1.bf16.msra.mxu0 %v244
      %267 = vmatprep.subr.bf16.mxu0 0
      %268 = vmatpush1.bf16.msra.mxu0 %v245
      %269 = vmatprep.subr.bf16.mxu0 0
      %270 = vmatpush1.bf16.msra.mxu0 %v246
      %271 = vmatprep.subr.bf16.mxu0 0
      %272 = vmatpush1.bf16.msra.mxu0 0
      %273 = vmatprep.subr.bf16.mxu0 0
      %274 = vmatpush1.bf16.msra.mxu0 0
      %275 = vmatprep.subr.bf16.mxu0 0
      %276 = vmatpush1.bf16.msra.mxu0 0
      %277 = vmatprep.subr.bf16.mxu0 0
      %278 = vmatpush1.bf16.msra.mxu0 0
      %279 = vmatprep.subr.bf16.mxu0 0
      %280 = vmatpush1.bf16.msra.mxu0 0
      %281 = vmatprep.subr.bf16.mxu0 0
      %282 = vmatpush1.bf16.msra.mxu0 0
      %283 = vmatprep.subr.bf16.mxu0 0
      %284 = vmatpush1.bf16.msra.mxu0 0
      %285 = vmatprep.subr.bf16.mxu0 0
      %286 = vmatpush1.bf16.msra.mxu0 0
      %287 = vmatprep.mubr.bf16.mxu0 0
      %288 = vmatmul.mubr.bf16.gmra.mrb[0].mxu0 %v183
      %v289 = vpop.f32.mrb[0].mxu0
      %v290 = vadd.f32 %v205, %v289
      %v291 = vpop.f32.mrb[0].mxu0
      %v292 = vpop.f32.mrb[0].mxu0
      %v293 = vadd.f32 %v205, %v292
      %v294 = vpop.f32.mrb[0].mxu0
      %295 = vdwg.mxu0
      %296 = vst [vmem:[%s5] sm:$0xff] %v290
      %297 = vst [vmem:[%s5 + $0x8] sm:$0xff] %v293
    $region37: #{_forward_jit.1} parent=1 // pred_fallthru
      _
    // Predicated region
    $region38: #{_forward_jit.1} parent=1 // pred_check
      _
    $region39: #{_forward_jit.1} parent=1 // pred_check_branch
      %299 = sbr.rel (0) target = $region41
    $region40: #{_forward_jit.1} parent=1 // pred_region
      _
    $region41: #{_forward_jit.1} parent=1 // pred_fallthru
      _
    // Predicated region
    $region42: #{_forward_jit.1} parent=1 // pred_check
      _
    $region43: #{_forward_jit.1} parent=1 // pred_check_branch
      %301 = sbr.rel (0) target = $region45
    $region44: #{_forward_jit.1} parent=1 // pred_region
      _
    $region45: #{_forward_jit.1} parent=1 // pred_fallthru
      _
    %302 = vsyncpa [#allocation4], 1
    %303 = vsyncpa [#allocation6], 1

</llo_original>
